<compile_context>
chip_gen: v6e
topology: v6e:2x2x1
jax: 0.10.0
libtpu: 0.0.40
codegen_flags: <defaults>
</compile_context>

<pallas_src>
import jax
import jax.numpy as jnp
from jax.experimental import pallas as pl
from jax.experimental.pallas import tpu as pltpu

_LANE = 128


def _round_up(v, m):
    return ((v + m - 1) // m) * m


def _discriminator_kernel(x_ref, w1_ref, b1_ref, w2_ref, b2_ref, o_ref, acc_ref):
    """One (batch-tile, K-tile) grid step.

    x_ref  : (TILE_B, TILE_K) bf16      w1_ref: (TILE_K, H) bf16
    b1_ref : (1, H) f32                 w2_ref: (1, H) f32  (W2 as a row)
    b2_ref : (1,) f32 scalar in SMEM    o_ref : (1, 1, TILE_B) f32 lane-dense
    acc_ref: (TILE_B, H) f32 scratch accumulator, resident across K steps.
    """
    k = pl.program_id(1)

    @pl.when(k == 0)
    def _():
        acc_ref[...] = jnp.zeros_like(acc_ref)

    # ---- Layer 1 partial product on the MXU: bf16 x bf16 -> f32 accumulate.
    acc_ref[...] += jnp.dot(x_ref[...], w1_ref[...],
                            preferred_element_type=jnp.float32)

    @pl.when(k == pl.num_programs(1) - 1)
    def _():
        h = acc_ref[...] + b1_ref[...]          # (TILE_B, H) + (1, H), f32
        h = jnp.maximum(h, 0.2 * h)             # LeakyReLU(0.2), single VALU op

        # ---- Layer 2 (output width == 1): VPU multiply against the W2 row
        # and a lane reduction instead of a 1-wide MXU matmul.
        out = jnp.sum(h * w2_ref[...], axis=-1, keepdims=True)   # (TILE_B, 1)
        out = out + b2_ref[0]                                     # SMEM scalar

        # Lane-dense store: batch maps to the lanes of a (1, 1, TILE_B) slab
        # (sublane->lane relayout rides the XLU slot under MXU/DMA slack).
        o_ref[...] = out.reshape(o_ref.shape).astype(o_ref.dtype)


def _resident_spec(shape, index_map, mode):
    if mode is None:
        return pl.BlockSpec(shape, index_map)
    return pl.BlockSpec(shape, index_map, pipeline_mode=mode)


def discriminator_forward(x, w1, b1, w2, b2, *, tile_b=1024,
                          vmem_budget_bytes=24 * 1024 * 1024):
    """x: (B, input_dim) f32; w1: (input_dim, H); b1: (H,); w2: (H, 1); b2: (1,).

    Returns (B, 1) f32, matching the PyTorch module's forward (layer-1 matmul
    runs with bf16 inputs on the MXU, accumulated and post-processed in f32).
    """
    B, d_in = x.shape
    H = w1.shape[1]

    # ---- K (contraction) tiling: bound W1 / x residency independent of d_in.
    w1_block_budget = 8 * 1024 * 1024               # bytes for W1 block(s) in VMEM
    if d_in * H * 2 <= w1_block_budget:
        tile_k, k_pad = d_in, d_in                  # single K step, W1 fully resident
    else:
        tile_k = _LANE
        while 2 * (2 * tile_k) * H * 2 <= w1_block_budget and 2 * tile_k < d_in:
            tile_k *= 2
        k_pad = _round_up(d_in, tile_k)
    num_k = k_pad // tile_k

    # ---- Batch tiling: lane-dense multiples of 128, capped for small batches.
    tile_b = max(_LANE, min(_round_up(tile_b, _LANE), _round_up(B, _LANE)))
    if B >= 2 * _LANE:
        # Guarantee >= 2 batch tiles so both v7x TensorCores get work.
        tile_b = min(tile_b, _round_up(-(-B // 2), _LANE))

    def working_set(tb):
        # Conservative: assume 2 buffers even for the resident W1 block.
        return (2 * tb * tile_k * 2          # double-buffered bf16 x tile
                + 2 * tile_k * H * 2         # bf16 W1 block(s)
                + tb * H * 4                 # f32 accumulator scratch
                + 2 * H * 4                  # b1 + W2 rows (f32)
                + 2 * tb * 4)                # double-buffered output slab

    while tile_b > _LANE and working_set(tile_b) > vmem_budget_bytes:
        tile_b -= _LANE

    num_tiles = -(-B // tile_b)
    b_pad = num_tiles * tile_b

    # Explicit scoped-VMEM limit: v5e defaults to 16 MiB and v7x has only
    # 64 MiB physical, so request what the working set needs (>= 32 MiB is
    # safe on every generation given the 24 MiB tile budget above).
    vmem_limit = max(32 * 1024 * 1024,
                     int(working_set(tile_b) * 1.25) + (2 << 20))

    # ---- Pad (zeros contribute nothing to the matmul) and cast.
    x_p = x
    if b_pad != B or k_pad != d_in:
        x_p = jnp.pad(x, ((0, b_pad - B), (0, k_pad - d_in)))
    w1_p = w1 if k_pad == d_in else jnp.pad(w1, ((0, k_pad - d_in), (0, 0)))

    x_b = x_p.astype(jnp.bfloat16)
    w1_b = w1_p.astype(jnp.bfloat16)
    b1_row = b1.reshape(1, H).astype(jnp.float32)
    w2_row = w2.reshape(1, H).astype(jnp.float32)     # (H, 1) -> (1, H) row
    b2_s = b2.reshape(1).astype(jnp.float32)          # scalar, lives in SMEM

    def build(resident_mode):
        in_specs = [
            # x: one (batch, K) tile per grid step (pipelined HBM<->VMEM DMA).
            # TODO(synk): consider pipeline_mode=pl.Buffered(3) for very skinny
            # x tiles (tiny d_in) where the copy latency is exposed.
            pl.BlockSpec((tile_b, tile_k), lambda i, k: (i, k)),
            # W1: constant over the batch axis; single-buffered when it is
            # fully resident (num_k == 1).
            _resident_spec((tile_k, H), lambda i, k: (k, 0),
                           resident_mode if num_k == 1 else None),
            _resident_spec((1, H), lambda i, k: (0, 0), resident_mode),
            _resident_spec((1, H), lambda i, k: (0, 0), resident_mode),
            # b2: a single scalar in SMEM (no padded VMEM tile / DMA).
            pl.BlockSpec((1,), lambda i, k: (0,),
                         memory_space=pltpu.MemorySpace.SMEM),
        ]
        return pl.pallas_call(
            _discriminator_kernel,
            out_shape=jax.ShapeDtypeStruct((num_tiles, 1, tile_b), jnp.float32),
            grid=(num_tiles, num_k),
            in_specs=in_specs,
            # Lane-dense output slab; reshaped back to (B, 1) outside.
            out_specs=pl.BlockSpec((1, 1, tile_b), lambda i, k: (i, 0, 0)),
            scratch_shapes=[pltpu.VMEM((tile_b, H), jnp.float32)],
            compiler_params=pltpu.CompilerParams(
                # Batch tiles independent -> shard across both v7x TCs;
                # K axis is a reduction -> "arbitrary".
                dimension_semantics=("parallel", "arbitrary"),
                vmem_limit_bytes=vmem_limit,
            ),
        )

    args = (x_b, w1_b, b1_row, w2_row, b2_s)
    try:
        # Resident blocks never re-DMA -> request 1-deep buffering to halve
        # their VMEM footprint (decisive for large d_in*H on v5e/v7x).
        out = build(pl.Buffered(1))(*args)
    except Exception:  # pragma: no cover - fall back if Buffered(1) unsupported
        out = build(None)(*args)

    return out.reshape(b_pad, 1)[:B]


def init_discriminator_params(key, input_dim, hidden_dim):
    """Mimics PyTorch nn.Linear default init: U(-1/sqrt(fan_in), +1/sqrt(fan_in))."""
    k1, k2, k3, k4 = jax.random.split(key, 4)
    bound1 = 1.0 / (input_dim ** 0.5)
    bound2 = 1.0 / (hidden_dim ** 0.5)
    w1 = jax.random.uniform(k1, (input_dim, hidden_dim), jnp.float32, -bound1, bound1)
    b1 = jax.random.uniform(k2, (hidden_dim,), jnp.float32, -bound1, bound1)
    w2 = jax.random.uniform(k3, (hidden_dim, 1), jnp.float32, -bound2, bound2)
    b2 = jax.random.uniform(k4, (1,), jnp.float32, -bound2, bound2)
    return w1, b1, w2, b2


if __name__ == "__main__":
    key = jax.random.PRNGKey(0)
    k_x, k_p = jax.random.split(key)

    batch, input_dim, hidden_dim = 8, 32, 64
    x = jax.random.normal(k_x, (batch, input_dim), jnp.float32)
    w1, b1, w2, b2 = init_discriminator_params(k_p, input_dim, hidden_dim)

    out = discriminator_forward(x, w1, b1, w2, b2)
    out = jax.block_until_ready(out)
    assert out.shape == (batch, 1)

    def ref_forward(xr, w1r):
        h = jnp.dot(xr, w1r, precision=jax.lax.Precision.HIGHEST) + b1
        h = jnp.where(h >= 0.0, h, 0.2 * h)
        return jnp.dot(h, w2, precision=jax.lax.Precision.HIGHEST) + b2

    # Tight check vs a reference with the same bf16-rounded layer-1 inputs.
    ref_bf16_in = ref_forward(x.astype(jnp.bfloat16).astype(jnp.float32),
                              w1.astype(jnp.bfloat16).astype(jnp.float32))
    assert jnp.allclose(out, ref_bf16_in, atol=1e-4, rtol=1e-4)

    # Loose check vs the full-f32 PyTorch-equivalent forward (bf16 MXU inputs).
    ref_f32 = ref_forward(x, w1)
    assert jnp.allclose(out, ref_f32, atol=3e-2, rtol=3e-2)

    print("KERNEL_OK")
</pallas_src>

<mosaic_0001>
module attributes {stable_mosaic.version = 11 : i64} {
  func.func @_discriminator_kernel(%arg0: i32, %arg1: i32, %arg2: memref<128x32xbf16, #tpu.memory_space<vmem>>, %arg3: memref<32x64xbf16, #tpu.memory_space<vmem>>, %arg4: memref<1x64xf32, #tpu.memory_space<vmem>>, %arg5: memref<1x64xf32, #tpu.memory_space<vmem>>, %arg6: memref<1xf32, #tpu.memory_space<smem>>, %arg7: memref<1x1x128xf32, #tpu.memory_space<vmem>>, %arg8: memref<128x64xf32, #tpu.memory_space<vmem>>) attributes {dimension_semantics = [#tpu.dimension_semantics<parallel>, #tpu.dimension_semantics<arbitrary>], iteration_bounds = array<i64: 1, 1>, scalar_prefetch = 0 : i64, scratch_operands = 1 : i64, tpu.core_type = #tpu.core_type<tc>, window_params = [{transform_indices = @transform_0, window_bounds = array<i64: 128, 32>}, {pipeline_mode = #tpu.pipeline_mode<synchronous>, transform_indices = @transform_1, window_bounds = array<i64: 32, 64>}, {pipeline_mode = #tpu.pipeline_mode<synchronous>, transform_indices = @transform_2, window_bounds = array<i64: 1, 64>}, {pipeline_mode = #tpu.pipeline_mode<synchronous>, transform_indices = @transform_3, window_bounds = array<i64: 1, 64>}, {transform_indices = @transform_4, window_bounds = array<i64: 1>}, {transform_indices = @transform_5, window_bounds = array<i64: 1, 1, 128>}]} {
    %c0_i32 = arith.constant 0 : i32
    %0 = arith.cmpi eq, %arg1, %c0_i32 : i32
    %1 = arith.extui %0 : i1 to i32
    %c0_i32_0 = arith.constant 0 : i32
    %2 = arith.cmpi ne, %1, %c0_i32_0 : i32
    scf.if %2 {
      %cst_10 = arith.constant 0.000000e+00 : f32
      %12 = vector.broadcast %cst_10 : f32 to vector<128x64xf32>
      %c0_11 = arith.constant 0 : index
      %c0_12 = arith.constant 0 : index
      %13 = vector.load %arg8[%c0_11, %c0_12] : memref<128x64xf32, #tpu.memory_space<vmem>>, vector<128x64xf32>
      tpu.vector_store %arg8[%c0_11, %c0_12], %12 {strides = array<i32>} : memref<128x64xf32, #tpu.memory_space<vmem>>, vector<128x64xf32>,
    } else {
    }
    %c0 = arith.constant 0 : index
    %c0_1 = arith.constant 0 : index
    %3 = vector.load %arg8[%c0, %c0_1] : memref<128x64xf32, #tpu.memory_space<vmem>>, vector<128x64xf32>
    %c0_2 = arith.constant 0 : index
    %c0_3 = arith.constant 0 : index
    %4 = vector.load %arg2[%c0_2, %c0_3] : memref<128x32xbf16, #tpu.memory_space<vmem>>, vector<128x32xbf16>
    %c0_4 = arith.constant 0 : index
    %c0_5 = arith.constant 0 : index
    %5 = vector.load %arg3[%c0_4, %c0_5] : memref<32x64xbf16, #tpu.memory_space<vmem>>, vector<32x64xbf16>
    %cst = arith.constant dense<0.000000e+00> : vector<128x64xf32>
    %6 = tpu.matmul %4, %5, %cst {dimension_numbers = #tpu.dot_dimension_numbers<[1], [0], [0], [1], [0, 0, 1, 1], [], []>} : vector<128x32xbf16>, vector<32x64xbf16>, vector<128x64xf32> -> vector<128x64xf32>
    %7 = arith.addf %3, %6 : vector<128x64xf32>
    %c0_6 = arith.constant 0 : index
    %c0_7 = arith.constant 0 : index
    %8 = vector.load %arg8[%c0_6, %c0_7] : memref<128x64xf32, #tpu.memory_space<vmem>>, vector<128x64xf32>
    tpu.vector_store %arg8[%c0_6, %c0_7], %7 {strides = array<i32>} : memref<128x64xf32, #tpu.memory_space<vmem>>, vector<128x64xf32>,
    %c0_i32_8 = arith.constant 0 : i32
    %9 = arith.cmpi eq, %arg1, %c0_i32_8 : i32
    %10 = arith.extui %9 : i1 to i32
    %c0_i32_9 = arith.constant 0 : i32
    %11 = arith.cmpi ne, %10, %c0_i32_9 : i32
    scf.if %11 {
      %c0_10 = arith.constant 0 : index
      %c0_11 = arith.constant 0 : index
      %12 = vector.load %arg8[%c0_10, %c0_11] : memref<128x64xf32, #tpu.memory_space<vmem>>, vector<128x64xf32>
      %c0_12 = arith.constant 0 : index
      %c0_13 = arith.constant 0 : index
      %13 = vector.load %arg4[%c0_12, %c0_13] : memref<1x64xf32, #tpu.memory_space<vmem>>, vector<1x64xf32>
      %14 = vector.broadcast %13 : vector<1x64xf32> to vector<128x64xf32>
      %15 = arith.addf %12, %14 : vector<128x64xf32>
      %cst_14 = arith.constant 2.000000e-01 : f32
      %16 = vector.broadcast %cst_14 : f32 to vector<128x64xf32>
      %17 = arith.mulf %16, %15 : vector<128x64xf32>
      %18 = arith.maximumf %15, %17 : vector<128x64xf32>
      %c0_15 = arith.constant 0 : index
      %c0_16 = arith.constant 0 : index
      %19 = vector.load %arg5[%c0_15, %c0_16] : memref<1x64xf32, #tpu.memory_space<vmem>>, vector<1x64xf32>
      %20 = vector.broadcast %19 : vector<1x64xf32> to vector<128x64xf32>
      %21 = arith.mulf %18, %20 : vector<128x64xf32>
      %cst_17 = arith.constant dense<0.000000e+00> : vector<128xf32>
      %22 = vector.multi_reduction <add>, %21, %cst_17 [1] : vector<128x64xf32> to vector<128xf32>
      %23 = vector.shape_cast %22 : vector<128xf32> to vector<128x1xf32>
      %c0_18 = arith.constant 0 : index
      %24 = memref.load %arg6[%c0_18] : memref<1xf32, #tpu.memory_space<smem>>
      %25 = vector.broadcast %24 : f32 to vector<128x1xf32>
      %26 = arith.addf %23, %25 : vector<128x1xf32>
      %27 = vector.shape_cast %26 : vector<128x1xf32> to vector<1x1x128xf32>
      %c0_19 = arith.constant 0 : index
      %c0_20 = arith.constant 0 : index
      %c0_21 = arith.constant 0 : index
      %28 = vector.load %arg7[%c0_19, %c0_20, %c0_21] : memref<1x1x128xf32, #tpu.memory_space<vmem>>, vector<1x1x128xf32>
      tpu.vector_store %arg7[%c0_19, %c0_20, %c0_21], %27 {strides = array<i32>} : memref<1x1x128xf32, #tpu.memory_space<vmem>>, vector<1x1x128xf32>,
    } else {
    }
    return
  }
  func.func @transform_0(%arg0: i32, %arg1: i32) -> (i32, i32) {
    %c0_i32 = arith.constant 0 : i32
    return %arg0, %arg1 : i32, i32
  }
  func.func @transform_1(%arg0: i32, %arg1: i32) -> (i32, i32) {
    %c0_i32 = arith.constant 0 : i32
    %c0_i32_0 = arith.constant 0 : i32
    return %arg1, %c0_i32 : i32, i32
  }
  func.func @transform_2(%arg0: i32, %arg1: i32) -> (i32, i32) {
    %c0_i32 = arith.constant 0 : i32
    %c0_i32_0 = arith.constant 0 : i32
    %c0_i32_1 = arith.constant 0 : i32
    return %c0_i32, %c0_i32_0 : i32, i32
  }
  func.func @transform_3(%arg0: i32, %arg1: i32) -> (i32, i32) {
    %c0_i32 = arith.constant 0 : i32
    %c0_i32_0 = arith.constant 0 : i32
    %c0_i32_1 = arith.constant 0 : i32
    return %c0_i32, %c0_i32_0 : i32, i32
  }
  func.func @transform_4(%arg0: i32, %arg1: i32) -> i32 {
    %c0_i32 = arith.constant 0 : i32
    %c0_i32_0 = arith.constant 0 : i32
    return %c0_i32 : i32
  }
  func.func @transform_5(%arg0: i32, %arg1: i32) -> (i32, i32, i32) {
    %c0_i32 = arith.constant 0 : i32
    %c0_i32_0 = arith.constant 0 : i32
    %c0_i32_1 = arith.constant 0 : i32
    return %arg0, %c0_i32, %c0_i32_0 : i32, i32, i32
  }
}

module attributes {stable_mosaic.version = 11 : i64} {
  func.func @_discriminator_kernel(%arg0: i32, %arg1: i32, %arg2: memref<128x32xbf16, #tpu.memory_space<vmem>>, %arg3: memref<32x64xbf16, #tpu.memory_space<vmem>>, %arg4: memref<1x64xf32, #tpu.memory_space<vmem>>, %arg5: memref<1x64xf32, #tpu.memory_space<vmem>>, %arg6: memref<1xf32, #tpu.memory_space<smem>>, %arg7: memref<1x1x128xf32, #tpu.memory_space<vmem>>, %arg8: memref<128x64xf32, #tpu.memory_space<vmem>>) attributes {dimension_semantics = [#tpu.dimension_semantics<parallel>, #tpu.dimension_semantics<arbitrary>], iteration_bounds = array<i64: 1, 1>, scalar_prefetch = 0 : i64, scratch_operands = 1 : i64, tpu.core_type = #tpu.core_type<tc>, window_params = [{transform_indices = @transform_0, window_bounds = array<i64: 128, 32>}, {transform_indices = @transform_1, window_bounds = array<i64: 32, 64>}, {pipeline_mode = #tpu.pipeline_mode<synchronous>, transform_indices = @transform_2, window_bounds = array<i64: 1, 64>}, {pipeline_mode = #tpu.pipeline_mode<synchronous>, transform_indices = @transform_3, window_bounds = array<i64: 1, 64>}, {transform_indices = @transform_4, window_bounds = array<i64: 1>}, {transform_indices = @transform_5, window_bounds = array<i64: 1, 1, 128>}]} {
    %c0_i32 = arith.constant 0 : i32
    %0 = arith.cmpi eq, %arg1, %c0_i32 : i32
    %1 = arith.extui %0 : i1 to i32
    %c0_i32_0 = arith.constant 0 : i32
    %2 = arith.cmpi ne, %1, %c0_i32_0 : i32
    scf.if %2 {
      %cst_10 = arith.constant 0.000000e+00 : f32
      %12 = vector.broadcast %cst_10 : f32 to vector<128x64xf32>
      %c0_11 = arith.constant 0 : index
      %c0_12 = arith.constant 0 : index
      %13 = vector.load %arg8[%c0_11, %c0_12] : memref<128x64xf32, #tpu.memory_space<vmem>>, vector<128x64xf32>
      tpu.vector_store %arg8[%c0_11, %c0_12], %12 {strides = array<i32>} : memref<128x64xf32, #tpu.memory_space<vmem>>, vector<128x64xf32>,
    } else {
    }
    %c0 = arith.constant 0 : index
    %c0_1 = arith.constant 0 : index
    %3 = vector.load %arg8[%c0, %c0_1] : memref<128x64xf32, #tpu.memory_space<vmem>>, vector<128x64xf32>
    %c0_2 = arith.constant 0 : index
    %c0_3 = arith.constant 0 : index
    %4 = vector.load %arg2[%c0_2, %c0_3] : memref<128x32xbf16, #tpu.memory_space<vmem>>, vector<128x32xbf16>
    %c0_4 = arith.constant 0 : index
    %c0_5 = arith.constant 0 : index
    %5 = vector.load %arg3[%c0_4, %c0_5] : memref<32x64xbf16, #tpu.memory_space<vmem>>, vector<32x64xbf16>
    %cst = arith.constant dense<0.000000e+00> : vector<128x64xf32>
    %6 = tpu.matmul %4, %5, %cst {dimension_numbers = #tpu.dot_dimension_numbers<[1], [0], [0], [1], [0, 0, 1, 1], [], []>} : vector<128x32xbf16>, vector<32x64xbf16>, vector<128x64xf32> -> vector<128x64xf32>
    %7 = arith.addf %3, %6 : vector<128x64xf32>
    %c0_6 = arith.constant 0 : index
    %c0_7 = arith.constant 0 : index
    %8 = vector.load %arg8[%c0_6, %c0_7] : memref<128x64xf32, #tpu.memory_space<vmem>>, vector<128x64xf32>
    tpu.vector_store %arg8[%c0_6, %c0_7], %7 {strides = array<i32>} : memref<128x64xf32, #tpu.memory_space<vmem>>, vector<128x64xf32>,
    %c0_i32_8 = arith.constant 0 : i32
    %9 = arith.cmpi eq, %arg1, %c0_i32_8 : i32
    %10 = arith.extui %9 : i1 to i32
    %c0_i32_9 = arith.constant 0 : i32
    %11 = arith.cmpi ne, %10, %c0_i32_9 : i32
    scf.if %11 {
      %c0_10 = arith.constant 0 : index
      %c0_11 = arith.constant 0 : index
      %12 = vector.load %arg8[%c0_10, %c0_11] : memref<128x64xf32, #tpu.memory_space<vmem>>, vector<128x64xf32>
      %c0_12 = arith.constant 0 : index
      %c0_13 = arith.constant 0 : index
      %13 = vector.load %arg4[%c0_12, %c0_13] : memref<1x64xf32, #tpu.memory_space<vmem>>, vector<1x64xf32>
      %14 = vector.broadcast %13 : vector<1x64xf32> to vector<128x64xf32>
      %15 = arith.addf %12, %14 : vector<128x64xf32>
      %cst_14 = arith.constant 2.000000e-01 : f32
      %16 = vector.broadcast %cst_14 : f32 to vector<128x64xf32>
      %17 = arith.mulf %16, %15 : vector<128x64xf32>
      %18 = arith.maximumf %15, %17 : vector<128x64xf32>
      %c0_15 = arith.constant 0 : index
      %c0_16 = arith.constant 0 : index
      %19 = vector.load %arg5[%c0_15, %c0_16] : memref<1x64xf32, #tpu.memory_space<vmem>>, vector<1x64xf32>
      %20 = vector.broadcast %19 : vector<1x64xf32> to vector<128x64xf32>
      %21 = arith.mulf %18, %20 : vector<128x64xf32>
      %cst_17 = arith.constant dense<0.000000e+00> : vector<128xf32>
      %22 = vector.multi_reduction <add>, %21, %cst_17 [1] : vector<128x64xf32> to vector<128xf32>
      %23 = vector.shape_cast %22 : vector<128xf32> to vector<128x1xf32>
      %c0_18 = arith.constant 0 : index
      %24 = memref.load %arg6[%c0_18] : memref<1xf32, #tpu.memory_space<smem>>
      %25 = vector.broadcast %24 : f32 to vector<128x1xf32>
      %26 = arith.addf %23, %25 : vector<128x1xf32>
      %27 = vector.shape_cast %26 : vector<128x1xf32> to vector<1x1x128xf32>
      %c0_19 = arith.constant 0 : index
      %c0_20 = arith.constant 0 : index
      %c0_21 = arith.constant 0 : index
      %28 = vector.load %arg7[%c0_19, %c0_20, %c0_21] : memref<1x1x128xf32, #tpu.memory_space<vmem>>, vector<1x1x128xf32>
      tpu.vector_store %arg7[%c0_19, %c0_20, %c0_21], %27 {strides = array<i32>} : memref<1x1x128xf32, #tpu.memory_space<vmem>>, vector<1x1x128xf32>,
    } else {
    }
    return
  }
  func.func @transform_0(%arg0: i32, %arg1: i32) -> (i32, i32) {
    %c0_i32 = arith.constant 0 : i32
    return %arg0, %arg1 : i32, i32
  }
  func.func @transform_1(%arg0: i32, %arg1: i32) -> (i32, i32) {
    %c0_i32 = arith.constant 0 : i32
    %c0_i32_0 = arith.constant 0 : i32
    return %arg1, %c0_i32 : i32, i32
  }
  func.func @transform_2(%arg0: i32, %arg1: i32) -> (i32, i32) {
    %c0_i32 = arith.constant 0 : i32
    %c0_i32_0 = arith.constant 0 : i32
    %c0_i32_1 = arith.constant 0 : i32
    return %c0_i32, %c0_i32_0 : i32, i32
  }
  func.func @transform_3(%arg0: i32, %arg1: i32) -> (i32, i32) {
    %c0_i32 = arith.constant 0 : i32
    %c0_i32_0 = arith.constant 0 : i32
    %c0_i32_1 = arith.constant 0 : i32
    return %c0_i32, %c0_i32_0 : i32, i32
  }
  func.func @transform_4(%arg0: i32, %arg1: i32) -> i32 {
    %c0_i32 = arith.constant 0 : i32
    %c0_i32_0 = arith.constant 0 : i32
    return %c0_i32 : i32
  }
  func.func @transform_5(%arg0: i32, %arg1: i32) -> (i32, i32, i32) {
    %c0_i32 = arith.constant 0 : i32
    %c0_i32_0 = arith.constant 0 : i32
    %c0_i32_1 = arith.constant 0 : i32
    return %arg0, %c0_i32, %c0_i32_0 : i32, i32, i32
  }
}

</mosaic_0001>

<llo_original>
// kernel: tpu_custom_call.1
$region0: #{tpu_custom_call.1}
  #allocation0 [shape = 'u32[]', space=smem, size = 0x4, offset = 0x4, fixed_abs, tag = 'smem constant byte address 0x4 - core index']
  #allocation1 [shape = 'u32[144,128]{1,0:T(1,128)}', space=vmem, size = 0x12000, scoped, tag = 'internal scratch']
  #allocation2 [shape = 'f32[128,64]{1,0:T(8,128)}', space=vmem, size = 0x10000, scoped, tag = 'scratch operand']
  #allocation3 [shape = 'f32[1]{0:T(128)S(6)}', space=smem, size = 0x200, scoped, tag = 'scoped memory for tpu_custom_call.1']
  %s0 = inlined_call_operand.vmem [shape: bf16[128,32], index: 0, kind: input, shape index: {}]
  %s1 = inlined_call_operand.vmem [shape: bf16[32,64], index: 1, kind: input, shape index: {}]
  %s2 = inlined_call_operand.vmem [shape: f32[1,64], index: 2, kind: input, shape index: {}]
  %s3 = inlined_call_operand.vmem [shape: f32[1,64], index: 3, kind: input, shape index: {}]
  %s4 = inlined_call_operand.<no memory space> [shape: f32[1], index: 4, kind: input, shape index: {}]
  %s5 = inlined_call_operand.hbm [shape: f32[1,1,128], index: 5, kind: output, shape index: {}]
  %s6 = sld [smem:[#allocation0]]
  $region38: #{tpu_custom_call.1} parent=0
    _
  %s8 = ssub.s32 1, %s6
  %s9 = scalar_select 0, %s8, %s6
  %10 = sst [smem:[#allocation3]] %s4
  $region1: #{tpu_custom_call.1} parent=0
    #allocation4 [shape = 'u8[512]{0}', space=vmem, size = 0x400, scoped, tag = 'output window, operand 0, single buffered']
    #allocation5 [shape = 's32[1]{0}', space=sflag, size = 0x4, scoped, tag = 'scoped memory for tpu_custom_call.1']
    %11 = vsyncpa [#allocation5], 0
    // Predicated region
    $region2: #{tpu_custom_call.1} parent=1 // pred_check
      _
    $region3: #{tpu_custom_call.1} parent=1 // pred_check_branch
      %13 = sbr.rel (0) target = $region5
    $region4: #{tpu_custom_call.1} parent=1 // pred_region
      _
    $region5: #{tpu_custom_call.1} parent=1 // pred_fallthru
      _
    // Predicated region
    $region6: #{tpu_custom_call.1} parent=1 // pred_check
      _
    $region7: #{tpu_custom_call.1} parent=1 // pred_check_branch
      %15 = sbr.rel (0) target = $region9
    $region8: #{tpu_custom_call.1} parent=1 // pred_region
      _
    $region9: #{tpu_custom_call.1} parent=1 // pred_fallthru
      _
    // Predicated region
    $region10: #{tpu_custom_call.1} parent=1 // pred_check
      _
    $region11: #{tpu_custom_call.1} parent=1 // pred_check_branch
      %17 = sbr.rel (0) target = $region13
    $region12: #{tpu_custom_call.1} parent=1 // pred_region
      _
    $region13: #{tpu_custom_call.1} parent=1 // pred_fallthru
      _
    // Predicated region
    $region14: #{tpu_custom_call.1} parent=1 // pred_check
      _
    $region15: #{tpu_custom_call.1} parent=1 // pred_check_branch
      %19 = sbr.rel (0) target = $region17
    $region16: #{tpu_custom_call.1} parent=1 // pred_region
      _
    $region17: #{tpu_custom_call.1} parent=1 // pred_fallthru
      _
    // Predicated region
    $region18: #{tpu_custom_call.1} parent=1 // pred_check
      _
    $region19: #{tpu_custom_call.1} parent=1 // pred_check_branch
      %21 = sbr.rel (0) target = $region21
    $region20: #{tpu_custom_call.1} parent=1 // pred_region
      _
    $region21: #{tpu_custom_call.1} parent=1 // pred_fallthru
      _
    %p23 = scmp.eq.s32.totalorder 0, 0
    // Predicated region
    $region22: #{tpu_custom_call.1} parent=1 // pred_check
      %p24 = pneg %p23
    $region23: #{tpu_custom_call.1} parent=1 // pred_check_branch
      %26 = sbr.rel (%p24) target = $region25
    $region24: #{tpu_custom_call.1} parent=1 // pred_region
      %vm27 = vcmask 523264
      %28 = vst.msk [vmem:[#allocation2] sm:$0xff] %vm27, 0.0
      %29 = vst.msk [vmem:[#allocation2 + $0x8] sm:$0xff] %vm27, 0.0
      %30 = vst.msk [vmem:[#allocation2 + $0x10] sm:$0xff] %vm27, 0.0
      %31 = vst.msk [vmem:[#allocation2 + $0x18] sm:$0xff] %vm27, 0.0
      %32 = vst.msk [vmem:[#allocation2 + $0x20] sm:$0xff] %vm27, 0.0
      %33 = vst.msk [vmem:[#allocation2 + $0x28] sm:$0xff] %vm27, 0.0
      %34 = vst.msk [vmem:[#allocation2 + $0x30] sm:$0xff] %vm27, 0.0
      %35 = vst.msk [vmem:[#allocation2 + $0x38] sm:$0xff] %vm27, 0.0
      %36 = vst.msk [vmem:[#allocation2 + $0x40] sm:$0xff] %vm27, 0.0
      %37 = vst.msk [vmem:[#allocation2 + $0x48] sm:$0xff] %vm27, 0.0
      %38 = vst.msk [vmem:[#allocation2 + $0x50] sm:$0xff] %vm27, 0.0
      %39 = vst.msk [vmem:[#allocation2 + $0x58] sm:$0xff] %vm27, 0.0
      %40 = vst.msk [vmem:[#allocation2 + $0x60] sm:$0xff] %vm27, 0.0
      %41 = vst.msk [vmem:[#allocation2 + $0x68] sm:$0xff] %vm27, 0.0
      %42 = vst.msk [vmem:[#allocation2 + $0x70] sm:$0xff] %vm27, 0.0
      %43 = vst.msk [vmem:[#allocation2 + $0x78] sm:$0xff] %vm27, 0.0
    $region25: #{tpu_custom_call.1} parent=1 // pred_fallthru
      _
    %v44 = vld [vmem:[#allocation2] sm:$0xff]
    %v45 = vld [vmem:[#allocation2 + $0x8] sm:$0xff]
    %v46 = vld [vmem:[#allocation2 + $0x10] sm:$0xff]
    %v47 = vld [vmem:[#allocation2 + $0x18] sm:$0xff]
    %v48 = vld [vmem:[#allocation2 + $0x20] sm:$0xff]
    %v49 = vld [vmem:[#allocation2 + $0x28] sm:$0xff]
    %v50 = vld [vmem:[#allocation2 + $0x30] sm:$0xff]
    %v51 = vld [vmem:[#allocation2 + $0x38] sm:$0xff]
    %v52 = vld [vmem:[#allocation2 + $0x40] sm:$0xff]
    %v53 = vld [vmem:[#allocation2 + $0x48] sm:$0xff]
    %v54 = vld [vmem:[#allocation2 + $0x50] sm:$0xff]
    %v55 = vld [vmem:[#allocation2 + $0x58] sm:$0xff]
    %v56 = vld [vmem:[#allocation2 + $0x60] sm:$0xff]
    %v57 = vld [vmem:[#allocation2 + $0x68] sm:$0xff]
    %v58 = vld [vmem:[#allocation2 + $0x70] sm:$0xff]
    %v59 = vld [vmem:[#allocation2 + $0x78] sm:$0xff]
    %v60 = vld [vmem:[%s0] sm:$0xf]
    %v61 = vld [vmem:[%s0 + $0x4] sm:$0xf]
    %v62 = vld [vmem:[%s0 + $0x8] sm:$0xf]
    %v63 = vld [vmem:[%s0 + $0xc] sm:$0xf]
    %v64 = vld [vmem:[%s0 + $0x10] sm:$0xf]
    %v65 = vld [vmem:[%s0 + $0x14] sm:$0xf]
    %v66 = vld [vmem:[%s0 + $0x18] sm:$0xf]
    %v67 = vld [vmem:[%s0 + $0x1c] sm:$0xf]
    %v68 = vld [vmem:[%s0 + $0x20] sm:$0xf]
    %v69 = vld [vmem:[%s0 + $0x24] sm:$0xf]
    %v70 = vld [vmem:[%s0 + $0x28] sm:$0xf]
    %v71 = vld [vmem:[%s0 + $0x2c] sm:$0xf]
    %v72 = vld [vmem:[%s0 + $0x30] sm:$0xf]
    %v73 = vld [vmem:[%s0 + $0x34] sm:$0xf]
    %v74 = vld [vmem:[%s0 + $0x38] sm:$0xf]
    %v75 = vld [vmem:[%s0 + $0x3c] sm:$0xf]
    %v76 = vld [vmem:[%s1] sm:$0xf]
    %v77 = vld [vmem:[%s1 + $0x4] sm:$0xf]
    %v78 = vld [vmem:[%s1 + $0x8] sm:$0xf]
    %v79 = vld [vmem:[%s1 + $0xc] sm:$0xf]
    %v96 = vunpack.c.l.b16 %v60
    %v97 = vunpack.c.l.b16 %v61
    %v98 = vunpack.c.l.b16 %v62
    %v99 = vunpack.c.l.b16 %v63
    %v100 = vunpack.c.l.b16 %v64
    %v101 = vunpack.c.l.b16 %v65
    %v102 = vunpack.c.l.b16 %v66
    %v103 = vunpack.c.l.b16 %v67
    %v104 = vunpack.c.l.b16 %v68
    %v105 = vunpack.c.l.b16 %v69
    %v106 = vunpack.c.l.b16 %v70
    %v107 = vunpack.c.l.b16 %v71
    %v108 = vunpack.c.l.b16 %v72
    %v109 = vunpack.c.l.b16 %v73
    %v110 = vunpack.c.l.b16 %v74
    %v111 = vunpack.c.l.b16 %v75
    %v112 = vpack.c.b16 %v97, %v96
    %v113 = vpack.c.b16 %v99, %v98
    %v114 = vpack.c.b16 %v101, %v100
    %v115 = vpack.c.b16 %v103, %v102
    %v116 = vpack.c.b16 %v105, %v104
    %v117 = vpack.c.b16 %v107, %v106
    %v118 = vpack.c.b16 %v109, %v108
    %v119 = vpack.c.b16 %v111, %v110
    %v124 = vunpack.c.l.b16 %v76
    %v125 = vunpack.c.l.b16 %v77
    %v126 = vunpack.c.l.b16 %v78
    %v127 = vunpack.c.l.b16 %v79
    %v128 = vpack.c.b16 %v125, %v124
    %v129 = vpack.c.b16 %v127, %v126
    %vm132 = vcmask 261120
    %v134 = vsel %vm132, %v112, 0
    %v137 = vsel %vm132, %v113, 0
    %v140 = vsel %vm132, %v114, 0
    %v143 = vsel %vm132, %v115, 0
    %v146 = vsel %vm132, %v116, 0
    %v149 = vsel %vm132, %v117, 0
    %v152 = vsel %vm132, %v118, 0
    %v155 = vsel %vm132, %v119, 0
    %157 = vmatprep.subr.bf16.mxu0 0
    %158 = vmatpush1.bf16.msra.mxu0 0
    %159 = vmatprep.subr.bf16.mxu0 0
    %160 = vmatpush1.bf16.msra.mxu0 0
    %161 = vmatprep.subr.bf16.mxu0 0
    %162 = vmatpush1.bf16.msra.mxu0 0
    %163 = vmatprep.subr.bf16.mxu0 0
    %164 = vmatpush1.bf16.msra.mxu0 0
    %165 = vmatprep.subr.bf16.mxu0 0
    %166 = vmatpush1.bf16.msra.mxu0 0
    %167 = vmatprep.subr.bf16.mxu0 0
    %168 = vmatpush1.bf16.msra.mxu0 0
    %169 = vmatprep.subr.bf16.mxu0 0
    %170 = vmatpush1.bf16.msra.mxu0 %v129
    %171 = vmatprep.subr.bf16.mxu0 0
    %172 = vmatpush1.bf16.msra.mxu0 %v128
    %173 = vmatprep.subr.bf16.mxu0 0
    %174 = vmatpush2.bf16.msra.mxu0 0
    %175 = vmatprep.subr.bf16.mxu0 0
    %176 = vmatpush2.bf16.msra.mxu0 0
    %177 = vmatprep.subr.bf16.mxu0 0
    %178 = vmatpush2.bf16.msra.mxu0 0
    %179 = vmatprep.subr.bf16.mxu0 0
    %180 = vmatpush2.bf16.msra.mxu0 0
    %181 = vmatprep.subr.bf16.mxu0 0
    %182 = vmatpush2.bf16.msra.mxu0 0
    %183 = vmatprep.subr.bf16.mxu0 0
    %184 = vmatpush2.bf16.msra.mxu0 0
    %185 = vmatprep.subr.bf16.mxu0 0
    %186 = vmatpush2.bf16.msra.mxu0 0
    %187 = vmatprep.subr.bf16.mxu0 0
    %188 = vmatpush2.bf16.msra.mxu0 0
    %189 = vmatprep.mubr.bf16.mxu0 0
    %190 = vmatmul.mubr.bf16.gmra.mxu0 %v134
    %v191 = vpop.f32.mrf.mxu0
    %v192 = vadd.f32 0.0, %v191
    %v193 = vpop.f32.mrf.mxu0
    %v194 = vpop.f32.mrf.mxu0
    %v195 = vadd.f32 0.0, %v194
    %v196 = vpop.f32.mrf.mxu0
    %197 = vmatprep.mubr.bf16.mxu0 0
    %198 = vmatmul.mubr.bf16.gmra.mxu0 %v137
    %v199 = vpop.f32.mrf.mxu0
    %v200 = vadd.f32 0.0, %v199
    %v201 = vpop.f32.mrf.mxu0
    %v202 = vpop.f32.mrf.mxu0
    %v203 = vadd.f32 0.0, %v202
    %v204 = vpop.f32.mrf.mxu0
    %205 = vmatprep.mubr.bf16.mxu0 0
    %206 = vmatmul.mubr.bf16.gmra.mxu0 %v140
    %v207 = vpop.f32.mrf.mxu0
    %v208 = vadd.f32 0.0, %v207
    %v209 = vpop.f32.mrf.mxu0
    %v210 = vpop.f32.mrf.mxu0
    %v211 = vadd.f32 0.0, %v210
    %v212 = vpop.f32.mrf.mxu0
    %213 = vmatprep.mubr.bf16.mxu0 0
    %214 = vmatmul.mubr.bf16.gmra.mxu0 %v143
    %v215 = vpop.f32.mrf.mxu0
    %v216 = vadd.f32 0.0, %v215
    %v217 = vpop.f32.mrf.mxu0
    %v218 = vpop.f32.mrf.mxu0
    %v219 = vadd.f32 0.0, %v218
    %v220 = vpop.f32.mrf.mxu0
    %221 = vmatprep.mubr.bf16.mxu0 0
    %222 = vmatmul.mubr.bf16.gmra.mxu0 %v146
    %v223 = vpop.f32.mrf.mxu0
    %v224 = vadd.f32 0.0, %v223
    %v225 = vpop.f32.mrf.mxu0
    %v226 = vpop.f32.mrf.mxu0
    %v227 = vadd.f32 0.0, %v226
    %v228 = vpop.f32.mrf.mxu0
    %229 = vmatprep.mubr.bf16.mxu0 0
    %230 = vmatmul.mubr.bf16.gmra.mxu0 %v149
    %v231 = vpop.f32.mrf.mxu0
    %v232 = vadd.f32 0.0, %v231
    %v233 = vpop.f32.mrf.mxu0
    %v234 = vpop.f32.mrf.mxu0
    %v235 = vadd.f32 0.0, %v234
    %v236 = vpop.f32.mrf.mxu0
    %237 = vmatprep.mubr.bf16.mxu0 0
    %238 = vmatmul.mubr.bf16.gmra.mxu0 %v152
    %v239 = vpop.f32.mrf.mxu0
    %v240 = vadd.f32 0.0, %v239
    %v241 = vpop.f32.mrf.mxu0
    %v242 = vpop.f32.mrf.mxu0
    %v243 = vadd.f32 0.0, %v242
    %v244 = vpop.f32.mrf.mxu0
    %245 = vmatprep.mubr.bf16.mxu0 0
    %246 = vmatmul.mubr.bf16.gmra.mxu0 %v155
    %v247 = vpop.f32.mrf.mxu0
    %v248 = vadd.f32 0.0, %v247
    %v249 = vpop.f32.mrf.mxu0
    %v250 = vpop.f32.mrf.mxu0
    %v251 = vadd.f32 0.0, %v250
    %v252 = vpop.f32.mrf.mxu0
    %253 = vdwg.mxu0
    %v254 = vadd.f32 %v44, %v192
    %v255 = vadd.f32 %v45, %v195
    %v256 = vadd.f32 %v46, %v200
    %v257 = vadd.f32 %v47, %v203
    %v258 = vadd.f32 %v48, %v208
    %v259 = vadd.f32 %v49, %v211
    %v260 = vadd.f32 %v50, %v216
    %v261 = vadd.f32 %v51, %v219
    %v262 = vadd.f32 %v52, %v224
    %v263 = vadd.f32 %v53, %v227
    %v264 = vadd.f32 %v54, %v232
    %v265 = vadd.f32 %v55, %v235
    %v266 = vadd.f32 %v56, %v240
    %v267 = vadd.f32 %v57, %v243
    %v268 = vadd.f32 %v58, %v248
    %v269 = vadd.f32 %v59, %v251
    %vm270 = vcmask 523264
    %271 = vst.msk [vmem:[#allocation2] sm:$0xff] %vm270, %v254
    %272 = vst.msk [vmem:[#allocation2 + $0x8] sm:$0xff] %vm270, %v255
    %273 = vst.msk [vmem:[#allocation2 + $0x10] sm:$0xff] %vm270, %v256
    %274 = vst.msk [vmem:[#allocation2 + $0x18] sm:$0xff] %vm270, %v257
    %275 = vst.msk [vmem:[#allocation2 + $0x20] sm:$0xff] %vm270, %v258
    %276 = vst.msk [vmem:[#allocation2 + $0x28] sm:$0xff] %vm270, %v259
    %277 = vst.msk [vmem:[#allocation2 + $0x30] sm:$0xff] %vm270, %v260
    %278 = vst.msk [vmem:[#allocation2 + $0x38] sm:$0xff] %vm270, %v261
    %279 = vst.msk [vmem:[#allocation2 + $0x40] sm:$0xff] %vm270, %v262
    %280 = vst.msk [vmem:[#allocation2 + $0x48] sm:$0xff] %vm270, %v263
    %281 = vst.msk [vmem:[#allocation2 + $0x50] sm:$0xff] %vm270, %v264
    %282 = vst.msk [vmem:[#allocation2 + $0x58] sm:$0xff] %vm270, %v265
    %283 = vst.msk [vmem:[#allocation2 + $0x60] sm:$0xff] %vm270, %v266
    %284 = vst.msk [vmem:[#allocation2 + $0x68] sm:$0xff] %vm270, %v267
    %285 = vst.msk [vmem:[#allocation2 + $0x70] sm:$0xff] %vm270, %v268
    %286 = vst.msk [vmem:[#allocation2 + $0x78] sm:$0xff] %vm270, %v269
    // Predicated region
    $region26: #{tpu_custom_call.1} parent=1 // pred_check
      %p287 = pneg %p23
    $region27: #{tpu_custom_call.1} parent=1 // pred_check_branch
      %289 = sbr.rel (%p287) target = $region29
    $region28: #{tpu_custom_call.1} parent=1 // pred_region
      %v290 = vld [vmem:[#allocation2] sm:$0xff]
      %v291 = vld [vmem:[#allocation2 + $0x8] sm:$0xff]
      %v292 = vld [vmem:[#allocation2 + $0x10] sm:$0xff]
      %v293 = vld [vmem:[#allocation2 + $0x18] sm:$0xff]
      %v294 = vld [vmem:[#allocation2 + $0x20] sm:$0xff]
      %v295 = vld [vmem:[#allocation2 + $0x28] sm:$0xff]
      %v296 = vld [vmem:[#allocation2 + $0x30] sm:$0xff]
      %v297 = vld [vmem:[#allocation2 + $0x38] sm:$0xff]
      %v298 = vld [vmem:[#allocation2 + $0x40] sm:$0xff]
      %v299 = vld [vmem:[#allocation2 + $0x48] sm:$0xff]
      %v300 = vld [vmem:[#allocation2 + $0x50] sm:$0xff]
      %v301 = vld [vmem:[#allocation2 + $0x58] sm:$0xff]
      %v302 = vld [vmem:[#allocation2 + $0x60] sm:$0xff]
      %v303 = vld [vmem:[#allocation2 + $0x68] sm:$0xff]
      %v304 = vld [vmem:[#allocation2 + $0x70] sm:$0xff]
      %v305 = vld [vmem:[#allocation2 + $0x78] sm:$0xff]
      %v306 = vld [vmem:[%s2] sm:$0x1]
      %v308 = vlaneseq
      %v309 = vshrl.u32 %v308, 7
      %v310 = vsub.s32 0, %v309
      %v311 = vrot.slane %v306, %v310
      %v313 = vadd.f32 %v290, %v311
      %v314 = vadd.f32 %v291, %v311
      %v315 = vadd.f32 %v292, %v311
      %v316 = vadd.f32 %v293, %v311
      %v317 = vadd.f32 %v294, %v311
      %v318 = vadd.f32 %v295, %v311
      %v319 = vadd.f32 %v296, %v311
      %v320 = vadd.f32 %v297, %v311
      %v321 = vadd.f32 %v298, %v311
      %v322 = vadd.f32 %v299, %v311
      %v323 = vadd.f32 %v300, %v311
      %v324 = vadd.f32 %v301, %v311
      %v325 = vadd.f32 %v302, %v311
      %v326 = vadd.f32 %v303, %v311
      %v327 = vadd.f32 %v304, %v311
      %v328 = vadd.f32 %v305, %v311
      %v329 = vmul.f32 %v313, 0.2
      %v330 = vmul.f32 %v314, 0.2
      %v331 = vmul.f32 %v315, 0.2
      %v332 = vmul.f32 %v316, 0.2
      %v333 = vmul.f32 %v317, 0.2
      %v334 = vmul.f32 %v318, 0.2
      %v335 = vmul.f32 %v319, 0.2
      %v336 = vmul.f32 %v320, 0.2
      %v337 = vmul.f32 %v321, 0.2
      %v338 = vmul.f32 %v322, 0.2
      %v339 = vmul.f32 %v323, 0.2
      %v340 = vmul.f32 %v324, 0.2
      %v341 = vmul.f32 %v325, 0.2
      %v342 = vmul.f32 %v326, 0.2
      %v343 = vmul.f32 %v327, 0.2
      %v344 = vmul.f32 %v328, 0.2
      %v345 = vmax.f32 %v313, %v329
      %v346 = vmax.f32 %v314, %v330
      %v347 = vmax.f32 %v315, %v331
      %v348 = vmax.f32 %v316, %v332
      %v349 = vmax.f32 %v317, %v333
      %v350 = vmax.f32 %v318, %v334
      %v351 = vmax.f32 %v319, %v335
      %v352 = vmax.f32 %v320, %v336
      %v353 = vmax.f32 %v321, %v337
      %v354 = vmax.f32 %v322, %v338
      %v355 = vmax.f32 %v323, %v339
      %v356 = vmax.f32 %v324, %v340
      %v357 = vmax.f32 %v325, %v341
      %v358 = vmax.f32 %v326, %v342
      %v359 = vmax.f32 %v327, %v343
      %v360 = vmax.f32 %v328, %v344
      %v361 = vld [vmem:[%s3] sm:$0x1]
      %v363 = vlaneseq
      %v364 = vshrl.u32 %v363, 7
      %v365 = vsub.s32 0, %v364
      %v366 = vrot.slane %v361, %v365
      %v368 = vmul.f32 %v345, %v366
      %v369 = vmul.f32 %v346, %v366
      %v370 = vmul.f32 %v347, %v366
      %v371 = vmul.f32 %v348, %v366
      %v372 = vmul.f32 %v349, %v366
      %v373 = vmul.f32 %v350, %v366
      %v374 = vmul.f32 %v351, %v366
      %v375 = vmul.f32 %v352, %v366
      %v376 = vmul.f32 %v353, %v366
      %v377 = vmul.f32 %v354, %v366
      %v378 = vmul.f32 %v355, %v366
      %v379 = vmul.f32 %v356, %v366
      %v380 = vmul.f32 %v357, %v366
      %v381 = vmul.f32 %v358, %v366
      %v382 = vmul.f32 %v359, %v366
      %v383 = vmul.f32 %v360, %v366
      %v384 = vsel %vm270, %v368, 0.0
      %385 = vadd.xlane.f32.xlu0 %v384
      %v386 = vpop.xlane.xlu0 %385
      %v387 = vsel %vm270, %v369, 0.0
      %388 = vadd.xlane.f32.xlu0 %v387
      %v389 = vpop.xlane.xlu0 %388
      %v390 = vsel %vm270, %v370, 0.0
      %391 = vadd.xlane.f32.xlu0 %v390
      %v392 = vpop.xlane.xlu0 %391
      %v393 = vsel %vm270, %v371, 0.0
      %394 = vadd.xlane.f32.xlu0 %v393
      %v395 = vpop.xlane.xlu0 %394
      %v396 = vsel %vm270, %v372, 0.0
      %397 = vadd.xlane.f32.xlu0 %v396
      %v398 = vpop.xlane.xlu0 %397
      %v399 = vsel %vm270, %v373, 0.0
      %400 = vadd.xlane.f32.xlu0 %v399
      %v401 = vpop.xlane.xlu0 %400
      %v402 = vsel %vm270, %v374, 0.0
      %403 = vadd.xlane.f32.xlu0 %v402
      %v404 = vpop.xlane.xlu0 %403
      %v405 = vsel %vm270, %v375, 0.0
      %406 = vadd.xlane.f32.xlu0 %v405
      %v407 = vpop.xlane.xlu0 %406
      %v408 = vsel %vm270, %v376, 0.0
      %409 = vadd.xlane.f32.xlu0 %v408
      %v410 = vpop.xlane.xlu0 %409
      %v411 = vsel %vm270, %v377, 0.0
      %412 = vadd.xlane.f32.xlu0 %v411
      %v413 = vpop.xlane.xlu0 %412
      %v414 = vsel %vm270, %v378, 0.0
      %415 = vadd.xlane.f32.xlu0 %v414
      %v416 = vpop.xlane.xlu0 %415
      %v417 = vsel %vm270, %v379, 0.0
      %418 = vadd.xlane.f32.xlu0 %v417
      %v419 = vpop.xlane.xlu0 %418
      %v420 = vsel %vm270, %v380, 0.0
      %421 = vadd.xlane.f32.xlu0 %v420
      %v422 = vpop.xlane.xlu0 %421
      %v423 = vsel %vm270, %v381, 0.0
      %424 = vadd.xlane.f32.xlu0 %v423
      %v425 = vpop.xlane.xlu0 %424
      %v426 = vsel %vm270, %v382, 0.0
      %427 = vadd.xlane.f32.xlu0 %v426
      %v428 = vpop.xlane.xlu0 %427
      %v429 = vsel %vm270, %v383, 0.0
      %430 = vadd.xlane.f32.xlu0 %v429
      %v431 = vpop.xlane.xlu0 %430
      %s432 = sld [smem:[#allocation3]]
      %v433 = vstv %s432
      %v434 = vadd.f32 %v386, %v433
      %v435 = vadd.f32 %v389, %v433
      %v436 = vadd.f32 %v392, %v433
      %v437 = vadd.f32 %v395, %v433
      %v438 = vadd.f32 %v398, %v433
      %v439 = vadd.f32 %v401, %v433
      %v440 = vadd.f32 %v404, %v433
      %v441 = vadd.f32 %v407, %v433
      %v442 = vadd.f32 %v410, %v433
      %v443 = vadd.f32 %v413, %v433
      %v444 = vadd.f32 %v416, %v433
      %v445 = vadd.f32 %v419, %v433
      %v446 = vadd.f32 %v422, %v433
      %v447 = vadd.f32 %v425, %v433
      %v448 = vadd.f32 %v428, %v433
      %v449 = vadd.f32 %v431, %v433
      %v466 = vlaneseq
      %v467 = vand.u32 %v466, 127
      %v468 = vlaneseq
      %v469 = vshrl.u32 %v468, 7
      %v470 = vsub.s32 %v467, %v469
      %v471 = vrot.slane %v434, %v470
      %v472 = vadd.s32 %v467, 4294967288
      %v473 = vlaneseq
      %v474 = vshrl.u32 %v473, 7
      %v475 = vsub.s32 %v472, %v474
      %v476 = vrot.slane %v435, %v475
      %vm477 = vcmask 130112
      %v478 = vsel %vm477, %v476, %v471
      %v479 = vadd.s32 %v467, 4294967280
      %v480 = vlaneseq
      %v481 = vshrl.u32 %v480, 7
      %v482 = vsub.s32 %v479, %v481
      %v483 = vrot.slane %v436, %v482
      %vm484 = vcmask 195712
      %v485 = vsel %vm484, %v483, %v478
      %v486 = vadd.s32 %v467, 4294967272
      %v487 = vlaneseq
      %v488 = vshrl.u32 %v487, 7
      %v489 = vsub.s32 %v486, %v488
      %v490 = vrot.slane %v437, %v489
      %vm491 = vcmask 261312
      %v492 = vsel %vm491, %v490, %v485
      %v493 = vadd.s32 %v467, 4294967264
      %v494 = vlaneseq
      %v495 = vshrl.u32 %v494, 7
      %v496 = vsub.s32 %v493, %v495
      %v497 = vrot.slane %v438, %v496
      %vm498 = vcmask 326912
      %v499 = vsel %vm498, %v497, %v492
      %v500 = vadd.s32 %v467, 4294967256
      %v501 = vlaneseq
      %v502 = vshrl.u32 %v501, 7
      %v503 = vsub.s32 %v500, %v502
      %v504 = vrot.slane %v439, %v503
      %vm505 = vcmask 392512
      %v506 = vsel %vm505, %v504, %v499
      %v507 = vadd.s32 %v467, 4294967248
      %v508 = vlaneseq
      %v509 = vshrl.u32 %v508, 7
      %v510 = vsub.s32 %v507, %v509
      %v511 = vrot.slane %v440, %v510
      %vm512 = vcmask 458112
      %v513 = vsel %vm512, %v511, %v506
      %v514 = vadd.s32 %v467, 4294967240
      %v515 = vlaneseq
      %v516 = vshrl.u32 %v515, 7
      %v517 = vsub.s32 %v514, %v516
      %v518 = vrot.slane %v441, %v517
      %vm519 = vcmask 523712
      %v520 = vsel %vm519, %v518, %v513
      %v521 = vadd.s32 %v467, 4294967232
      %v522 = vlaneseq
      %v523 = vshrl.u32 %v522, 7
      %v524 = vsub.s32 %v521, %v523
      %v525 = vrot.slane %v442, %v524
      %vm526 = vcmask 589312
      %v527 = vsel %vm526, %v525, %v520
      %v528 = vadd.s32 %v467, 4294967224
      %v529 = vlaneseq
      %v530 = vshrl.u32 %v529, 7
      %v531 = vsub.s32 %v528, %v530
      %v532 = vrot.slane %v443, %v531
      %vm533 = vcmask 654912
      %v534 = vsel %vm533, %v532, %v527
      %v535 = vadd.s32 %v467, 4294967216
      %v536 = vlaneseq
      %v537 = vshrl.u32 %v536, 7
      %v538 = vsub.s32 %v535, %v537
      %v539 = vrot.slane %v444, %v538
      %vm540 = vcmask 720512
      %v541 = vsel %vm540, %v539, %v534
      %v542 = vadd.s32 %v467, 4294967208
      %v543 = vlaneseq
      %v544 = vshrl.u32 %v543, 7
      %v545 = vsub.s32 %v542, %v544
      %v546 = vrot.slane %v445, %v545
      %vm547 = vcmask 786112
      %v548 = vsel %vm547, %v546, %v541
      %v549 = vadd.s32 %v467, 4294967200
      %v550 = vlaneseq
      %v551 = vshrl.u32 %v550, 7
      %v552 = vsub.s32 %v549, %v551
      %v553 = vrot.slane %v446, %v552
      %vm554 = vcmask 851712
      %v555 = vsel %vm554, %v553, %v548
      %v556 = vadd.s32 %v467, 4294967192
      %v557 = vlaneseq
      %v558 = vshrl.u32 %v557, 7
      %v559 = vsub.s32 %v556, %v558
      %v560 = vrot.slane %v447, %v559
      %vm561 = vcmask 917312
      %v562 = vsel %vm561, %v560, %v555
      %v563 = vadd.s32 %v467, 4294967184
      %v564 = vlaneseq
      %v565 = vshrl.u32 %v564, 7
      %v566 = vsub.s32 %v563, %v565
      %v567 = vrot.slane %v448, %v566
      %vm568 = vcmask 982912
      %v569 = vsel %vm568, %v567, %v562
      %v570 = vadd.s32 %v467, 4294967176
      %v571 = vlaneseq
      %v572 = vshrl.u32 %v571, 7
      %v573 = vsub.s32 %v570, %v572
      %v574 = vrot.slane %v449, %v573
      %vm575 = vcmask 1048512
      %v576 = vsel %vm575, %v574, %v569
      %578 = vst [vmem:[#allocation4] sm:$0x1] %v576
    $region29: #{tpu_custom_call.1} parent=1 // pred_fallthru
      _
    // Predicated region
    $region30: #{tpu_custom_call.1} parent=1 // pred_check
      _
    $region31: #{tpu_custom_call.1} parent=1 // pred_check_branch
      %580 = sbr.rel (0) target = $region33
    $region32: #{tpu_custom_call.1} parent=1 // pred_region
      %s582 = ssub.s32 16, 16
      %583 = vsyncadd [#allocation5], %s582
      %s585 = sshll.u32 [#allocation4], 4
      %s586 = int_to_ptr.vmem [resolvable:$true] %s585
      %588 = dma.vmem_to_hbm [thread:$0]  %s586, 16, %s5, [#allocation5]
    $region33: #{tpu_custom_call.1} parent=1 // pred_fallthru
      _
    // Predicated region
    $region34: #{tpu_custom_call.1} parent=1 // pred_check
      _
    $region35: #{tpu_custom_call.1} parent=1 // pred_check_branch
      %590 = sbr.rel (0) target = $region37
    $region36: #{tpu_custom_call.1} parent=1 // pred_region
      %591 = dma.done [#allocation5], 16
    $region37: #{tpu_custom_call.1} parent=1 // pred_fallthru
      _
    %592 = vsyncpa [#allocation5], 1

// kernel: tpu_custom_call.1
$region0: #{tpu_custom_call.1}
  #allocation0 [shape = 'u32[]', space=smem, size = 0x4, offset = 0x4, fixed_abs, tag = 'smem constant byte address 0x4 - core index']
  #allocation1 [shape = 'u32[144,128]{1,0:T(1,128)}', space=vmem, size = 0x12000, scoped, tag = 'internal scratch']
  #allocation2 [shape = 'f32[128,64]{1,0:T(8,128)}', space=vmem, size = 0x10000, scoped, tag = 'scratch operand']
  #allocation3 [shape = 'f32[1]{0:T(128)S(6)}', space=smem, size = 0x200, scoped, tag = 'scoped memory for tpu_custom_call.1']
  %s0 = inlined_call_operand.vmem [shape: bf16[128,32], index: 0, kind: input, shape index: {}]
  %s1 = inlined_call_operand.vmem [shape: bf16[32,64], index: 1, kind: input, shape index: {}]
  %s2 = inlined_call_operand.vmem [shape: f32[1,64], index: 2, kind: input, shape index: {}]
  %s3 = inlined_call_operand.vmem [shape: f32[1,64], index: 3, kind: input, shape index: {}]
  %s4 = inlined_call_operand.<no memory space> [shape: f32[1], index: 4, kind: input, shape index: {}]
  %s5 = inlined_call_operand.hbm [shape: f32[1,1,128], index: 5, kind: output, shape index: {}]
  %s6 = sld [smem:[#allocation0]]
  $region38: #{tpu_custom_call.1} parent=0
    _
  %s8 = ssub.s32 1, %s6
  %s9 = scalar_select 0, %s8, %s6
  %10 = sst [smem:[#allocation3]] %s4
  $region1: #{tpu_custom_call.1} parent=0
    #allocation4 [shape = 'u8[512]{0}', space=vmem, size = 0x400, scoped, tag = 'output window, operand 0, single buffered']
    #allocation5 [shape = 's32[1]{0}', space=sflag, size = 0x4, scoped, tag = 'scoped memory for tpu_custom_call.1']
    %11 = vsyncpa [#allocation5], 0
    // Predicated region
    $region2: #{tpu_custom_call.1} parent=1 // pred_check
      _
    $region3: #{tpu_custom_call.1} parent=1 // pred_check_branch
      %13 = sbr.rel (0) target = $region5
    $region4: #{tpu_custom_call.1} parent=1 // pred_region
      _
    $region5: #{tpu_custom_call.1} parent=1 // pred_fallthru
      _
    // Predicated region
    $region6: #{tpu_custom_call.1} parent=1 // pred_check
      _
    $region7: #{tpu_custom_call.1} parent=1 // pred_check_branch
      %15 = sbr.rel (0) target = $region9
    $region8: #{tpu_custom_call.1} parent=1 // pred_region
      _
    $region9: #{tpu_custom_call.1} parent=1 // pred_fallthru
      _
    // Predicated region
    $region10: #{tpu_custom_call.1} parent=1 // pred_check
      _
    $region11: #{tpu_custom_call.1} parent=1 // pred_check_branch
      %17 = sbr.rel (0) target = $region13
    $region12: #{tpu_custom_call.1} parent=1 // pred_region
      _
    $region13: #{tpu_custom_call.1} parent=1 // pred_fallthru
      _
    // Predicated region
    $region14: #{tpu_custom_call.1} parent=1 // pred_check
      _
    $region15: #{tpu_custom_call.1} parent=1 // pred_check_branch
      %19 = sbr.rel (0) target = $region17
    $region16: #{tpu_custom_call.1} parent=1 // pred_region
      _
    $region17: #{tpu_custom_call.1} parent=1 // pred_fallthru
      _
    // Predicated region
    $region18: #{tpu_custom_call.1} parent=1 // pred_check
      _
    $region19: #{tpu_custom_call.1} parent=1 // pred_check_branch
      %21 = sbr.rel (0) target = $region21
    $region20: #{tpu_custom_call.1} parent=1 // pred_region
      _
    $region21: #{tpu_custom_call.1} parent=1 // pred_fallthru
      _
    %p23 = scmp.eq.s32.totalorder 0, 0
    // Predicated region
    $region22: #{tpu_custom_call.1} parent=1 // pred_check
      %p24 = pneg %p23
    $region23: #{tpu_custom_call.1} parent=1 // pred_check_branch
      %26 = sbr.rel (%p24) target = $region25
    $region24: #{tpu_custom_call.1} parent=1 // pred_region
      %vm27 = vcmask 523264
      %28 = vst.msk [vmem:[#allocation2] sm:$0xff] %vm27, 0.0
      %29 = vst.msk [vmem:[#allocation2 + $0x8] sm:$0xff] %vm27, 0.0
      %30 = vst.msk [vmem:[#allocation2 + $0x10] sm:$0xff] %vm27, 0.0
      %31 = vst.msk [vmem:[#allocation2 + $0x18] sm:$0xff] %vm27, 0.0
      %32 = vst.msk [vmem:[#allocation2 + $0x20] sm:$0xff] %vm27, 0.0
      %33 = vst.msk [vmem:[#allocation2 + $0x28] sm:$0xff] %vm27, 0.0
      %34 = vst.msk [vmem:[#allocation2 + $0x30] sm:$0xff] %vm27, 0.0
      %35 = vst.msk [vmem:[#allocation2 + $0x38] sm:$0xff] %vm27, 0.0
      %36 = vst.msk [vmem:[#allocation2 + $0x40] sm:$0xff] %vm27, 0.0
      %37 = vst.msk [vmem:[#allocation2 + $0x48] sm:$0xff] %vm27, 0.0
      %38 = vst.msk [vmem:[#allocation2 + $0x50] sm:$0xff] %vm27, 0.0
      %39 = vst.msk [vmem:[#allocation2 + $0x58] sm:$0xff] %vm27, 0.0
      %40 = vst.msk [vmem:[#allocation2 + $0x60] sm:$0xff] %vm27, 0.0
      %41 = vst.msk [vmem:[#allocation2 + $0x68] sm:$0xff] %vm27, 0.0
      %42 = vst.msk [vmem:[#allocation2 + $0x70] sm:$0xff] %vm27, 0.0
      %43 = vst.msk [vmem:[#allocation2 + $0x78] sm:$0xff] %vm27, 0.0
    $region25: #{tpu_custom_call.1} parent=1 // pred_fallthru
      _
    %v44 = vld [vmem:[#allocation2] sm:$0xff]
    %v45 = vld [vmem:[#allocation2 + $0x8] sm:$0xff]
    %v46 = vld [vmem:[#allocation2 + $0x10] sm:$0xff]
    %v47 = vld [vmem:[#allocation2 + $0x18] sm:$0xff]
    %v48 = vld [vmem:[#allocation2 + $0x20] sm:$0xff]
    %v49 = vld [vmem:[#allocation2 + $0x28] sm:$0xff]
    %v50 = vld [vmem:[#allocation2 + $0x30] sm:$0xff]
    %v51 = vld [vmem:[#allocation2 + $0x38] sm:$0xff]
    %v52 = vld [vmem:[#allocation2 + $0x40] sm:$0xff]
    %v53 = vld [vmem:[#allocation2 + $0x48] sm:$0xff]
    %v54 = vld [vmem:[#allocation2 + $0x50] sm:$0xff]
    %v55 = vld [vmem:[#allocation2 + $0x58] sm:$0xff]
    %v56 = vld [vmem:[#allocation2 + $0x60] sm:$0xff]
    %v57 = vld [vmem:[#allocation2 + $0x68] sm:$0xff]
    %v58 = vld [vmem:[#allocation2 + $0x70] sm:$0xff]
    %v59 = vld [vmem:[#allocation2 + $0x78] sm:$0xff]
    %v60 = vld [vmem:[%s0] sm:$0xf]
    %v61 = vld [vmem:[%s0 + $0x4] sm:$0xf]
    %v62 = vld [vmem:[%s0 + $0x8] sm:$0xf]
    %v63 = vld [vmem:[%s0 + $0xc] sm:$0xf]
    %v64 = vld [vmem:[%s0 + $0x10] sm:$0xf]
    %v65 = vld [vmem:[%s0 + $0x14] sm:$0xf]
    %v66 = vld [vmem:[%s0 + $0x18] sm:$0xf]
    %v67 = vld [vmem:[%s0 + $0x1c] sm:$0xf]
    %v68 = vld [vmem:[%s0 + $0x20] sm:$0xf]
    %v69 = vld [vmem:[%s0 + $0x24] sm:$0xf]
    %v70 = vld [vmem:[%s0 + $0x28] sm:$0xf]
    %v71 = vld [vmem:[%s0 + $0x2c] sm:$0xf]
    %v72 = vld [vmem:[%s0 + $0x30] sm:$0xf]
    %v73 = vld [vmem:[%s0 + $0x34] sm:$0xf]
    %v74 = vld [vmem:[%s0 + $0x38] sm:$0xf]
    %v75 = vld [vmem:[%s0 + $0x3c] sm:$0xf]
    %v76 = vld [vmem:[%s1] sm:$0xf]
    %v77 = vld [vmem:[%s1 + $0x4] sm:$0xf]
    %v78 = vld [vmem:[%s1 + $0x8] sm:$0xf]
    %v79 = vld [vmem:[%s1 + $0xc] sm:$0xf]
    %v96 = vunpack.c.l.b16 %v60
    %v97 = vunpack.c.l.b16 %v61
    %v98 = vunpack.c.l.b16 %v62
    %v99 = vunpack.c.l.b16 %v63
    %v100 = vunpack.c.l.b16 %v64
    %v101 = vunpack.c.l.b16 %v65
    %v102 = vunpack.c.l.b16 %v66
    %v103 = vunpack.c.l.b16 %v67
    %v104 = vunpack.c.l.b16 %v68
    %v105 = vunpack.c.l.b16 %v69
    %v106 = vunpack.c.l.b16 %v70
    %v107 = vunpack.c.l.b16 %v71
    %v108 = vunpack.c.l.b16 %v72
    %v109 = vunpack.c.l.b16 %v73
    %v110 = vunpack.c.l.b16 %v74
    %v111 = vunpack.c.l.b16 %v75
    %v112 = vpack.c.b16 %v97, %v96
    %v113 = vpack.c.b16 %v99, %v98
    %v114 = vpack.c.b16 %v101, %v100
    %v115 = vpack.c.b16 %v103, %v102
    %v116 = vpack.c.b16 %v105, %v104
    %v117 = vpack.c.b16 %v107, %v106
    %v118 = vpack.c.b16 %v109, %v108
    %v119 = vpack.c.b16 %v111, %v110
    %v124 = vunpack.c.l.b16 %v76
    %v125 = vunpack.c.l.b16 %v77
    %v126 = vunpack.c.l.b16 %v78
    %v127 = vunpack.c.l.b16 %v79
    %v128 = vpack.c.b16 %v125, %v124
    %v129 = vpack.c.b16 %v127, %v126
    %vm132 = vcmask 261120
    %v134 = vsel %vm132, %v112, 0
    %v137 = vsel %vm132, %v113, 0
    %v140 = vsel %vm132, %v114, 0
    %v143 = vsel %vm132, %v115, 0
    %v146 = vsel %vm132, %v116, 0
    %v149 = vsel %vm132, %v117, 0
    %v152 = vsel %vm132, %v118, 0
    %v155 = vsel %vm132, %v119, 0
    %157 = vmatprep.subr.bf16.mxu0 0
    %158 = vmatpush1.bf16.msra.mxu0 0
    %159 = vmatprep.subr.bf16.mxu0 0
    %160 = vmatpush1.bf16.msra.mxu0 0
    %161 = vmatprep.subr.bf16.mxu0 0
    %162 = vmatpush1.bf16.msra.mxu0 0
    %163 = vmatprep.subr.bf16.mxu0 0
    %164 = vmatpush1.bf16.msra.mxu0 0
    %165 = vmatprep.subr.bf16.mxu0 0
    %166 = vmatpush1.bf16.msra.mxu0 0
    %167 = vmatprep.subr.bf16.mxu0 0
    %168 = vmatpush1.bf16.msra.mxu0 0
    %169 = vmatprep.subr.bf16.mxu0 0
    %170 = vmatpush1.bf16.msra.mxu0 %v129
    %171 = vmatprep.subr.bf16.mxu0 0
    %172 = vmatpush1.bf16.msra.mxu0 %v128
    %173 = vmatprep.subr.bf16.mxu0 0
    %174 = vmatpush2.bf16.msra.mxu0 0
    %175 = vmatprep.subr.bf16.mxu0 0
    %176 = vmatpush2.bf16.msra.mxu0 0
    %177 = vmatprep.subr.bf16.mxu0 0
    %178 = vmatpush2.bf16.msra.mxu0 0
    %179 = vmatprep.subr.bf16.mxu0 0
    %180 = vmatpush2.bf16.msra.mxu0 0
    %181 = vmatprep.subr.bf16.mxu0 0
    %182 = vmatpush2.bf16.msra.mxu0 0
    %183 = vmatprep.subr.bf16.mxu0 0
    %184 = vmatpush2.bf16.msra.mxu0 0
    %185 = vmatprep.subr.bf16.mxu0 0
    %186 = vmatpush2.bf16.msra.mxu0 0
    %187 = vmatprep.subr.bf16.mxu0 0
    %188 = vmatpush2.bf16.msra.mxu0 0
    %189 = vmatprep.mubr.bf16.mxu0 0
    %190 = vmatmul.mubr.bf16.gmra.mxu0 %v134
    %v191 = vpop.f32.mrf.mxu0
    %v192 = vadd.f32 0.0, %v191
    %v193 = vpop.f32.mrf.mxu0
    %v194 = vpop.f32.mrf.mxu0
    %v195 = vadd.f32 0.0, %v194
    %v196 = vpop.f32.mrf.mxu0
    %197 = vmatprep.mubr.bf16.mxu0 0
    %198 = vmatmul.mubr.bf16.gmra.mxu0 %v137
    %v199 = vpop.f32.mrf.mxu0
    %v200 = vadd.f32 0.0, %v199
    %v201 = vpop.f32.mrf.mxu0
    %v202 = vpop.f32.mrf.mxu0
    %v203 = vadd.f32 0.0, %v202
    %v204 = vpop.f32.mrf.mxu0
    %205 = vmatprep.mubr.bf16.mxu0 0
    %206 = vmatmul.mubr.bf16.gmra.mxu0 %v140
    %v207 = vpop.f32.mrf.mxu0
    %v208 = vadd.f32 0.0, %v207
    %v209 = vpop.f32.mrf.mxu0
    %v210 = vpop.f32.mrf.mxu0
    %v211 = vadd.f32 0.0, %v210
    %v212 = vpop.f32.mrf.mxu0
    %213 = vmatprep.mubr.bf16.mxu0 0
    %214 = vmatmul.mubr.bf16.gmra.mxu0 %v143
    %v215 = vpop.f32.mrf.mxu0
    %v216 = vadd.f32 0.0, %v215
    %v217 = vpop.f32.mrf.mxu0
    %v218 = vpop.f32.mrf.mxu0
    %v219 = vadd.f32 0.0, %v218
    %v220 = vpop.f32.mrf.mxu0
    %221 = vmatprep.mubr.bf16.mxu0 0
    %222 = vmatmul.mubr.bf16.gmra.mxu0 %v146
    %v223 = vpop.f32.mrf.mxu0
    %v224 = vadd.f32 0.0, %v223
    %v225 = vpop.f32.mrf.mxu0
    %v226 = vpop.f32.mrf.mxu0
    %v227 = vadd.f32 0.0, %v226
    %v228 = vpop.f32.mrf.mxu0
    %229 = vmatprep.mubr.bf16.mxu0 0
    %230 = vmatmul.mubr.bf16.gmra.mxu0 %v149
    %v231 = vpop.f32.mrf.mxu0
    %v232 = vadd.f32 0.0, %v231
    %v233 = vpop.f32.mrf.mxu0
    %v234 = vpop.f32.mrf.mxu0
    %v235 = vadd.f32 0.0, %v234
    %v236 = vpop.f32.mrf.mxu0
    %237 = vmatprep.mubr.bf16.mxu0 0
    %238 = vmatmul.mubr.bf16.gmra.mxu0 %v152
    %v239 = vpop.f32.mrf.mxu0
    %v240 = vadd.f32 0.0, %v239
    %v241 = vpop.f32.mrf.mxu0
    %v242 = vpop.f32.mrf.mxu0
    %v243 = vadd.f32 0.0, %v242
    %v244 = vpop.f32.mrf.mxu0
    %245 = vmatprep.mubr.bf16.mxu0 0
    %246 = vmatmul.mubr.bf16.gmra.mxu0 %v155
    %v247 = vpop.f32.mrf.mxu0
    %v248 = vadd.f32 0.0, %v247
    %v249 = vpop.f32.mrf.mxu0
    %v250 = vpop.f32.mrf.mxu0
    %v251 = vadd.f32 0.0, %v250
    %v252 = vpop.f32.mrf.mxu0
    %253 = vdwg.mxu0
    %v254 = vadd.f32 %v44, %v192
    %v255 = vadd.f32 %v45, %v195
    %v256 = vadd.f32 %v46, %v200
    %v257 = vadd.f32 %v47, %v203
    %v258 = vadd.f32 %v48, %v208
    %v259 = vadd.f32 %v49, %v211
    %v260 = vadd.f32 %v50, %v216
    %v261 = vadd.f32 %v51, %v219
    %v262 = vadd.f32 %v52, %v224
    %v263 = vadd.f32 %v53, %v227
    %v264 = vadd.f32 %v54, %v232
    %v265 = vadd.f32 %v55, %v235
    %v266 = vadd.f32 %v56, %v240
    %v267 = vadd.f32 %v57, %v243
    %v268 = vadd.f32 %v58, %v248
    %v269 = vadd.f32 %v59, %v251
    %vm270 = vcmask 523264
    %271 = vst.msk [vmem:[#allocation2] sm:$0xff] %vm270, %v254
    %272 = vst.msk [vmem:[#allocation2 + $0x8] sm:$0xff] %vm270, %v255
    %273 = vst.msk [vmem:[#allocation2 + $0x10] sm:$0xff] %vm270, %v256
    %274 = vst.msk [vmem:[#allocation2 + $0x18] sm:$0xff] %vm270, %v257
    %275 = vst.msk [vmem:[#allocation2 + $0x20] sm:$0xff] %vm270, %v258
    %276 = vst.msk [vmem:[#allocation2 + $0x28] sm:$0xff] %vm270, %v259
    %277 = vst.msk [vmem:[#allocation2 + $0x30] sm:$0xff] %vm270, %v260
    %278 = vst.msk [vmem:[#allocation2 + $0x38] sm:$0xff] %vm270, %v261
    %279 = vst.msk [vmem:[#allocation2 + $0x40] sm:$0xff] %vm270, %v262
    %280 = vst.msk [vmem:[#allocation2 + $0x48] sm:$0xff] %vm270, %v263
    %281 = vst.msk [vmem:[#allocation2 + $0x50] sm:$0xff] %vm270, %v264
    %282 = vst.msk [vmem:[#allocation2 + $0x58] sm:$0xff] %vm270, %v265
    %283 = vst.msk [vmem:[#allocation2 + $0x60] sm:$0xff] %vm270, %v266
    %284 = vst.msk [vmem:[#allocation2 + $0x68] sm:$0xff] %vm270, %v267
    %285 = vst.msk [vmem:[#allocation2 + $0x70] sm:$0xff] %vm270, %v268
    %286 = vst.msk [vmem:[#allocation2 + $0x78] sm:$0xff] %vm270, %v269
    // Predicated region
    $region26: #{tpu_custom_call.1} parent=1 // pred_check
      %p287 = pneg %p23
    $region27: #{tpu_custom_call.1} parent=1 // pred_check_branch
      %289 = sbr.rel (%p287) target = $region29
    $region28: #{tpu_custom_call.1} parent=1 // pred_region
      %v290 = vld [vmem:[#allocation2] sm:$0xff]
      %v291 = vld [vmem:[#allocation2 + $0x8] sm:$0xff]
      %v292 = vld [vmem:[#allocation2 + $0x10] sm:$0xff]
      %v293 = vld [vmem:[#allocation2 + $0x18] sm:$0xff]
      %v294 = vld [vmem:[#allocation2 + $0x20] sm:$0xff]
      %v295 = vld [vmem:[#allocation2 + $0x28] sm:$0xff]
      %v296 = vld [vmem:[#allocation2 + $0x30] sm:$0xff]
      %v297 = vld [vmem:[#allocation2 + $0x38] sm:$0xff]
      %v298 = vld [vmem:[#allocation2 + $0x40] sm:$0xff]
      %v299 = vld [vmem:[#allocation2 + $0x48] sm:$0xff]
      %v300 = vld [vmem:[#allocation2 + $0x50] sm:$0xff]
      %v301 = vld [vmem:[#allocation2 + $0x58] sm:$0xff]
      %v302 = vld [vmem:[#allocation2 + $0x60] sm:$0xff]
      %v303 = vld [vmem:[#allocation2 + $0x68] sm:$0xff]
      %v304 = vld [vmem:[#allocation2 + $0x70] sm:$0xff]
      %v305 = vld [vmem:[#allocation2 + $0x78] sm:$0xff]
      %v306 = vld [vmem:[%s2] sm:$0x1]
      %v308 = vlaneseq
      %v309 = vshrl.u32 %v308, 7
      %v310 = vsub.s32 0, %v309
      %v311 = vrot.slane %v306, %v310
      %v313 = vadd.f32 %v290, %v311
      %v314 = vadd.f32 %v291, %v311
      %v315 = vadd.f32 %v292, %v311
      %v316 = vadd.f32 %v293, %v311
      %v317 = vadd.f32 %v294, %v311
      %v318 = vadd.f32 %v295, %v311
      %v319 = vadd.f32 %v296, %v311
      %v320 = vadd.f32 %v297, %v311
      %v321 = vadd.f32 %v298, %v311
      %v322 = vadd.f32 %v299, %v311
      %v323 = vadd.f32 %v300, %v311
      %v324 = vadd.f32 %v301, %v311
      %v325 = vadd.f32 %v302, %v311
      %v326 = vadd.f32 %v303, %v311
      %v327 = vadd.f32 %v304, %v311
      %v328 = vadd.f32 %v305, %v311
      %v329 = vmul.f32 %v313, 0.2
      %v330 = vmul.f32 %v314, 0.2
      %v331 = vmul.f32 %v315, 0.2
      %v332 = vmul.f32 %v316, 0.2
      %v333 = vmul.f32 %v317, 0.2
      %v334 = vmul.f32 %v318, 0.2
      %v335 = vmul.f32 %v319, 0.2
      %v336 = vmul.f32 %v320, 0.2
      %v337 = vmul.f32 %v321, 0.2
      %v338 = vmul.f32 %v322, 0.2
      %v339 = vmul.f32 %v323, 0.2
      %v340 = vmul.f32 %v324, 0.2
      %v341 = vmul.f32 %v325, 0.2
      %v342 = vmul.f32 %v326, 0.2
      %v343 = vmul.f32 %v327, 0.2
      %v344 = vmul.f32 %v328, 0.2
      %v345 = vmax.f32 %v313, %v329
      %v346 = vmax.f32 %v314, %v330
      %v347 = vmax.f32 %v315, %v331
      %v348 = vmax.f32 %v316, %v332
      %v349 = vmax.f32 %v317, %v333
      %v350 = vmax.f32 %v318, %v334
      %v351 = vmax.f32 %v319, %v335
      %v352 = vmax.f32 %v320, %v336
      %v353 = vmax.f32 %v321, %v337
      %v354 = vmax.f32 %v322, %v338
      %v355 = vmax.f32 %v323, %v339
      %v356 = vmax.f32 %v324, %v340
      %v357 = vmax.f32 %v325, %v341
      %v358 = vmax.f32 %v326, %v342
      %v359 = vmax.f32 %v327, %v343
      %v360 = vmax.f32 %v328, %v344
      %v361 = vld [vmem:[%s3] sm:$0x1]
      %v363 = vlaneseq
      %v364 = vshrl.u32 %v363, 7
      %v365 = vsub.s32 0, %v364
      %v366 = vrot.slane %v361, %v365
      %v368 = vmul.f32 %v345, %v366
      %v369 = vmul.f32 %v346, %v366
      %v370 = vmul.f32 %v347, %v366
      %v371 = vmul.f32 %v348, %v366
      %v372 = vmul.f32 %v349, %v366
      %v373 = vmul.f32 %v350, %v366
      %v374 = vmul.f32 %v351, %v366
      %v375 = vmul.f32 %v352, %v366
      %v376 = vmul.f32 %v353, %v366
      %v377 = vmul.f32 %v354, %v366
      %v378 = vmul.f32 %v355, %v366
      %v379 = vmul.f32 %v356, %v366
      %v380 = vmul.f32 %v357, %v366
      %v381 = vmul.f32 %v358, %v366
      %v382 = vmul.f32 %v359, %v366
      %v383 = vmul.f32 %v360, %v366
      %v384 = vsel %vm270, %v368, 0.0
      %385 = vadd.xlane.f32.xlu0 %v384
      %v386 = vpop.xlane.xlu0 %385
      %v387 = vsel %vm270, %v369, 0.0
      %388 = vadd.xlane.f32.xlu0 %v387
      %v389 = vpop.xlane.xlu0 %388
      %v390 = vsel %vm270, %v370, 0.0
      %391 = vadd.xlane.f32.xlu0 %v390
      %v392 = vpop.xlane.xlu0 %391
      %v393 = vsel %vm270, %v371, 0.0
      %394 = vadd.xlane.f32.xlu0 %v393
      %v395 = vpop.xlane.xlu0 %394
      %v396 = vsel %vm270, %v372, 0.0
      %397 = vadd.xlane.f32.xlu0 %v396
      %v398 = vpop.xlane.xlu0 %397
      %v399 = vsel %vm270, %v373, 0.0
      %400 = vadd.xlane.f32.xlu0 %v399
      %v401 = vpop.xlane.xlu0 %400
      %v402 = vsel %vm270, %v374, 0.0
      %403 = vadd.xlane.f32.xlu0 %v402
      %v404 = vpop.xlane.xlu0 %403
      %v405 = vsel %vm270, %v375, 0.0
      %406 = vadd.xlane.f32.xlu0 %v405
      %v407 = vpop.xlane.xlu0 %406
      %v408 = vsel %vm270, %v376, 0.0
      %409 = vadd.xlane.f32.xlu0 %v408
      %v410 = vpop.xlane.xlu0 %409
      %v411 = vsel %vm270, %v377, 0.0
      %412 = vadd.xlane.f32.xlu0 %v411
      %v413 = vpop.xlane.xlu0 %412
      %v414 = vsel %vm270, %v378, 0.0
      %415 = vadd.xlane.f32.xlu0 %v414
      %v416 = vpop.xlane.xlu0 %415
      %v417 = vsel %vm270, %v379, 0.0
      %418 = vadd.xlane.f32.xlu0 %v417
      %v419 = vpop.xlane.xlu0 %418
      %v420 = vsel %vm270, %v380, 0.0
      %421 = vadd.xlane.f32.xlu0 %v420
      %v422 = vpop.xlane.xlu0 %421
      %v423 = vsel %vm270, %v381, 0.0
      %424 = vadd.xlane.f32.xlu0 %v423
      %v425 = vpop.xlane.xlu0 %424
      %v426 = vsel %vm270, %v382, 0.0
      %427 = vadd.xlane.f32.xlu0 %v426
      %v428 = vpop.xlane.xlu0 %427
      %v429 = vsel %vm270, %v383, 0.0
      %430 = vadd.xlane.f32.xlu0 %v429
      %v431 = vpop.xlane.xlu0 %430
      %s432 = sld [smem:[#allocation3]]
      %v433 = vstv %s432
      %v434 = vadd.f32 %v386, %v433
      %v435 = vadd.f32 %v389, %v433
      %v436 = vadd.f32 %v392, %v433
      %v437 = vadd.f32 %v395, %v433
      %v438 = vadd.f32 %v398, %v433
      %v439 = vadd.f32 %v401, %v433
      %v440 = vadd.f32 %v404, %v433
      %v441 = vadd.f32 %v407, %v433
      %v442 = vadd.f32 %v410, %v433
      %v443 = vadd.f32 %v413, %v433
      %v444 = vadd.f32 %v416, %v433
      %v445 = vadd.f32 %v419, %v433
      %v446 = vadd.f32 %v422, %v433
      %v447 = vadd.f32 %v425, %v433
      %v448 = vadd.f32 %v428, %v433
      %v449 = vadd.f32 %v431, %v433
      %v466 = vlaneseq
      %v467 = vand.u32 %v466, 127
      %v468 = vlaneseq
      %v469 = vshrl.u32 %v468, 7
      %v470 = vsub.s32 %v467, %v469
      %v471 = vrot.slane %v434, %v470
      %v472 = vadd.s32 %v467, 4294967288
      %v473 = vlaneseq
      %v474 = vshrl.u32 %v473, 7
      %v475 = vsub.s32 %v472, %v474
      %v476 = vrot.slane %v435, %v475
      %vm477 = vcmask 130112
      %v478 = vsel %vm477, %v476, %v471
      %v479 = vadd.s32 %v467, 4294967280
      %v480 = vlaneseq
      %v481 = vshrl.u32 %v480, 7
      %v482 = vsub.s32 %v479, %v481
      %v483 = vrot.slane %v436, %v482
      %vm484 = vcmask 195712
      %v485 = vsel %vm484, %v483, %v478
      %v486 = vadd.s32 %v467, 4294967272
      %v487 = vlaneseq
      %v488 = vshrl.u32 %v487, 7
      %v489 = vsub.s32 %v486, %v488
      %v490 = vrot.slane %v437, %v489
      %vm491 = vcmask 261312
      %v492 = vsel %vm491, %v490, %v485
      %v493 = vadd.s32 %v467, 4294967264
      %v494 = vlaneseq
      %v495 = vshrl.u32 %v494, 7
      %v496 = vsub.s32 %v493, %v495
      %v497 = vrot.slane %v438, %v496
      %vm498 = vcmask 326912
      %v499 = vsel %vm498, %v497, %v492
      %v500 = vadd.s32 %v467, 4294967256
      %v501 = vlaneseq
      %v502 = vshrl.u32 %v501, 7
      %v503 = vsub.s32 %v500, %v502
      %v504 = vrot.slane %v439, %v503
      %vm505 = vcmask 392512
      %v506 = vsel %vm505, %v504, %v499
      %v507 = vadd.s32 %v467, 4294967248
      %v508 = vlaneseq
      %v509 = vshrl.u32 %v508, 7
      %v510 = vsub.s32 %v507, %v509
      %v511 = vrot.slane %v440, %v510
      %vm512 = vcmask 458112
      %v513 = vsel %vm512, %v511, %v506
      %v514 = vadd.s32 %v467, 4294967240
      %v515 = vlaneseq
      %v516 = vshrl.u32 %v515, 7
      %v517 = vsub.s32 %v514, %v516
      %v518 = vrot.slane %v441, %v517
      %vm519 = vcmask 523712
      %v520 = vsel %vm519, %v518, %v513
      %v521 = vadd.s32 %v467, 4294967232
      %v522 = vlaneseq
      %v523 = vshrl.u32 %v522, 7
      %v524 = vsub.s32 %v521, %v523
      %v525 = vrot.slane %v442, %v524
      %vm526 = vcmask 589312
      %v527 = vsel %vm526, %v525, %v520
      %v528 = vadd.s32 %v467, 4294967224
      %v529 = vlaneseq
      %v530 = vshrl.u32 %v529, 7
      %v531 = vsub.s32 %v528, %v530
      %v532 = vrot.slane %v443, %v531
      %vm533 = vcmask 654912
      %v534 = vsel %vm533, %v532, %v527
      %v535 = vadd.s32 %v467, 4294967216
      %v536 = vlaneseq
      %v537 = vshrl.u32 %v536, 7
      %v538 = vsub.s32 %v535, %v537
      %v539 = vrot.slane %v444, %v538
      %vm540 = vcmask 720512
      %v541 = vsel %vm540, %v539, %v534
      %v542 = vadd.s32 %v467, 4294967208
      %v543 = vlaneseq
      %v544 = vshrl.u32 %v543, 7
      %v545 = vsub.s32 %v542, %v544
      %v546 = vrot.slane %v445, %v545
      %vm547 = vcmask 786112
      %v548 = vsel %vm547, %v546, %v541
      %v549 = vadd.s32 %v467, 4294967200
      %v550 = vlaneseq
      %v551 = vshrl.u32 %v550, 7
      %v552 = vsub.s32 %v549, %v551
      %v553 = vrot.slane %v446, %v552
      %vm554 = vcmask 851712
      %v555 = vsel %vm554, %v553, %v548
      %v556 = vadd.s32 %v467, 4294967192
      %v557 = vlaneseq
      %v558 = vshrl.u32 %v557, 7
      %v559 = vsub.s32 %v556, %v558
      %v560 = vrot.slane %v447, %v559
      %vm561 = vcmask 917312
      %v562 = vsel %vm561, %v560, %v555
      %v563 = vadd.s32 %v467, 4294967184
      %v564 = vlaneseq
      %v565 = vshrl.u32 %v564, 7
      %v566 = vsub.s32 %v563, %v565
      %v567 = vrot.slane %v448, %v566
      %vm568 = vcmask 982912
      %v569 = vsel %vm568, %v567, %v562
      %v570 = vadd.s32 %v467, 4294967176
      %v571 = vlaneseq
      %v572 = vshrl.u32 %v571, 7
      %v573 = vsub.s32 %v570, %v572
      %v574 = vrot.slane %v449, %v573
      %vm575 = vcmask 1048512
      %v576 = vsel %vm575, %v574, %v569
      %578 = vst [vmem:[#allocation4] sm:$0x1] %v576
    $region29: #{tpu_custom_call.1} parent=1 // pred_fallthru
      _
    // Predicated region
    $region30: #{tpu_custom_call.1} parent=1 // pred_check
      _
    $region31: #{tpu_custom_call.1} parent=1 // pred_check_branch
      %580 = sbr.rel (0) target = $region33
    $region32: #{tpu_custom_call.1} parent=1 // pred_region
      %s582 = ssub.s32 16, 16
      %583 = vsyncadd [#allocation5], %s582
      %s585 = sshll.u32 [#allocation4], 4
      %s586 = int_to_ptr.vmem [resolvable:$true] %s585
      %588 = dma.vmem_to_hbm [thread:$0]  %s586, 16, %s5, [#allocation5]
    $region33: #{tpu_custom_call.1} parent=1 // pred_fallthru
      _
    // Predicated region
    $region34: #{tpu_custom_call.1} parent=1 // pred_check
      _
    $region35: #{tpu_custom_call.1} parent=1 // pred_check_branch
      %590 = sbr.rel (0) target = $region37
    $region36: #{tpu_custom_call.1} parent=1 // pred_region
      %591 = dma.done [#allocation5], 16
    $region37: #{tpu_custom_call.1} parent=1 // pred_fallthru
      _
    %592 = vsyncpa [#allocation5], 1

</llo_original>
